<compile_context>
chip_gen: v7x
topology: tpu7x:2x2x1
jax: 0.10.0
libtpu: 0.0.40
codegen_flags: <defaults>
</compile_context>

<pallas_src>
import functools
from typing import List

import jax
import jax.numpy as jnp
from jax.experimental import pallas as pl
from jax.experimental.pallas import tpu as pltpu


def _round_up(x: int, m: int) -> int:
    return ((x + m - 1) // m) * m


def _mlp_logsoftmax_kernel(num_hidden_layers: int, *refs):
    """Kernel body.

    refs = (x, w_in, b_in, [w_h_i, b_h_i] * num_hidden_layers, w_out, b_out, out)
    Activations are (batch_tile, features): batch -> sublanes, features -> lanes.
    x and all weights are bf16 (features padded to 128 lanes); biases are f32.
    Padded vocab lanes of b_out carry -1e30, so no in-kernel mask is needed.
    """
    x_ref, w_in_ref, b_in_ref = refs[0], refs[1], refs[2]
    o_ref = refs[-1]
    mid = refs[3:-1]

    # _in_layer: single bf16 x bf16 -> f32 MXU dot, bias add in f32.
    h = jnp.dot(x_ref[...], w_in_ref[...],
                preferred_element_type=jnp.float32) + b_in_ref[...]

    # hidden layers: relu -> linear   (num_layers - 1 of them)
    idx = 0
    for _ in range(num_hidden_layers):
        w = mid[idx][...]
        b = mid[idx + 1][...]
        idx += 2
        h = jnp.maximum(h, 0.0)                    # f32 elementwise (v5e-safe)
        h = jnp.dot(h.astype(jnp.bfloat16), w,
                    preferred_element_type=jnp.float32) + b

    # final relu -> _out_layer
    h = jnp.maximum(h, 0.0)
    w_out = mid[idx][...]
    b_out = mid[idx + 1][...]
    logits = jnp.dot(h.astype(jnp.bfloat16), w_out,
                     preferred_element_type=jnp.float32) + b_out

    # LogSoftmax(dim=1), f32.  Padded vocab lanes are ~-1e30: they never win
    # the max and their exp underflows to exactly 0, so results over the true
    # vocabulary are unchanged.
    m = jnp.max(logits, axis=1, keepdims=True)
    shifted = logits - m
    lse = jnp.log(jnp.sum(jnp.exp(shifted), axis=1, keepdims=True))
    o_ref[...] = shifted - lse


def features_classifier_pallas(vec_features, word_features, params):
    """Forward pass matching FeaturesClassifier.forward.

    vec_features:  (B, vec_features_size) float32
    word_features: (B, num_word_features) int32
    Returns (B, tactic_vocab_size) float32 log-probabilities.
    """
    batch = vec_features.shape[0]

    # Embedding lookups (data-dependent gathers) stay in JAX.  Tables are bf16,
    # so the gathered rows and the concatenated x tile are already bf16 and the
    # kernel needs no per-step activation casts.
    embedded = [tbl[word_features[:, i]]
                for i, tbl in enumerate(params["embeddings"])]
    x = jnp.concatenate([vec_features.astype(jnp.bfloat16)] + embedded, axis=1)
    in_dim = x.shape[1]

    w_in, b_in = params["w_in"], params["b_in"]
    hidden = params["hidden"]
    w_out, b_out = params["w_out"], params["b_out"]
    num_hidden_layers = len(hidden)            # == num_layers - 1
    h_pad = w_in.shape[1]                      # hidden padded to 128 lanes
    v_pad = w_out.shape[1]                     # vocab padded to 128 lanes
    valid_vocab = params["tactic_vocab_size"]

    weights = [w_in, b_in]
    for (w, b) in hidden:
        weights += [w, b]
    weights += [w_out, b_out]
    weight_bytes = sum(int(a.size) * a.dtype.itemsize for a in weights)

    # Batch tile: as big as the VMEM budget allows (amortizes per-step overhead
    # and the serialized softmax epilogue), multiple of 16 (bf16 sublane
    # packing), capped at 512.  Budget assumes v7x's 64 MiB VMEM so the same
    # tiling is safe on v5e/v6e/v7x; weights are single-buffered (Buffered(1)).
    per_row_bytes = (2 * in_dim * 2            # bf16 x tile, double-buffered
                     + 2 * v_pad * 4           # f32 out tile, double-buffered
                     + 8 * (h_pad + v_pad))    # f32 activation/logit temporaries
    budget = 48 << 20
    avail = max(budget - weight_bytes, per_row_bytes * 16)
    tb_cap = max(16, (avail // per_row_bytes) // 16 * 16)
    tb = int(min(512, tb_cap, _round_up(batch, 16)))
    b_pad = _round_up(batch, tb)
    if b_pad != batch:
        x = jnp.pad(x, ((0, b_pad - batch), (0, 0)))
    grid = (b_pad // tb,)

    def row_spec(ncols):
        # Tiled along batch only; features kept whole (lane axis).
        return pl.BlockSpec((tb, ncols), lambda i: (i, 0))

    def resident_spec(shape):
        # Constant block index -> stays VMEM-resident across the batch loop.
        # Buffered(1): no second pipeline buffer for data that never changes.
        return pl.BlockSpec(shape, lambda i: (0, 0),
                            pipeline_mode=pl.Buffered(1))

    kernel_args = [x] + weights
    in_specs = [row_spec(in_dim)] + [resident_spec(w.shape) for w in weights]

    # Explicit VMEM budget: single-buffered weights + per-tile working set +
    # headroom, capped at 64 MiB (v7x physical per-TC VMEM).
    vmem_limit = int(min(64 << 20,
                         weight_bytes + tb * per_row_bytes + (16 << 20)))

    # v7x has 2 TensorCores/chip: CORE_PARALLEL actually shards the batch loop
    # across them; plain PARALLEL elsewhere.
    kind = jax.devices()[0].device_kind.lower()
    batch_sem = pltpu.CORE_PARALLEL if "v7" in kind else pltpu.PARALLEL

    flops = 2 * b_pad * (in_dim * h_pad
                         + num_hidden_layers * h_pad * h_pad
                         + h_pad * v_pad)
    bytes_accessed = int(x.size) * 2 + weight_bytes + b_pad * v_pad * 4

    out = pl.pallas_call(
        functools.partial(_mlp_logsoftmax_kernel, num_hidden_layers),
        out_shape=jax.ShapeDtypeStruct((b_pad, v_pad), jnp.float32),
        grid=grid,
        in_specs=in_specs,
        out_specs=row_spec(v_pad),
        compiler_params=pltpu.CompilerParams(
            dimension_semantics=(batch_sem,),
            vmem_limit_bytes=vmem_limit),
        cost_estimate=pl.CostEstimate(
            flops=flops,
            transcendentals=b_pad * v_pad + b_pad,
            bytes_accessed=bytes_accessed),
    )(*kernel_args)

    return out[:batch, :valid_vocab]


def init_params(key,
                vec_features_size: int,
                word_feature_vocab_sizes: List[int],
                hidden_size: int,
                word_embedding_size: int,
                tactic_vocab_size: int,
                num_layers: int):
    """Deterministic synthetic parameters matching the module's shapes.

    Kernel weights are zero-padded to 128-lane multiples and stored in bf16
    (biases stay f32).  Padded hidden lanes carry zero weight+bias so they stay
    exactly zero through relu; padded vocab lanes get a -1e30 bias so the
    in-kernel log-softmax needs no mask.  Embedding tables are bf16 so the
    gathered activations feed the kernel without per-step casts.  Unpadded f32
    copies are kept under "ref" for the pure-JAX reference.
    """
    h_pad = _round_up(hidden_size, 128)
    v_pad = _round_up(tactic_vocab_size, 128)
    num_emb = len(word_feature_vocab_sizes)

    keys = jax.random.split(key, num_emb + num_layers + 1)
    k_iter = iter(keys)

    def linear(k, fan_in, fan_out):
        kw, kb = jax.random.split(k)
        bound = 1.0 / jnp.sqrt(fan_in)
        w = jax.random.uniform(kw, (fan_in, fan_out), jnp.float32, -bound, bound)
        b = jax.random.uniform(kb, (1, fan_out), jnp.float32, -bound, bound)
        return w, b

    def pad_cols(a, target, value=0.0):
        return jnp.pad(a, ((0, 0), (0, target - a.shape[1])),
                       constant_values=value)

    def pad_rows(a, target):
        return jnp.pad(a, ((0, target - a.shape[0]), (0, 0)))

    embeddings = [jax.random.normal(next(k_iter),
                                    (vocab, word_embedding_size),
                                    jnp.float32).astype(jnp.bfloat16)
                  for vocab in word_feature_vocab_sizes]

    in_dim = vec_features_size + num_emb * word_embedding_size

    w_in_f32, b_in_f32 = linear(next(k_iter), in_dim, hidden_size)
    hidden_f32 = [linear(next(k_iter), hidden_size, hidden_size)
                  for _ in range(num_layers - 1)]
    w_out_f32, b_out_f32 = linear(next(k_iter), hidden_size, tactic_vocab_size)

    return {
        "embeddings": embeddings,
        "tactic_vocab_size": tactic_vocab_size,
        # Kernel (padded, bf16 weights / f32 biases).
        "w_in": pad_cols(w_in_f32, h_pad).astype(jnp.bfloat16),
        "b_in": pad_cols(b_in_f32, h_pad),
        "hidden": [(pad_rows(pad_cols(w, h_pad), h_pad).astype(jnp.bfloat16),
                    pad_cols(b, h_pad)) for (w, b) in hidden_f32],
        "w_out": pad_rows(pad_cols(w_out_f32, v_pad), h_pad).astype(jnp.bfloat16),
        # Padded vocab lanes carry -1e30 so log-softmax needs no in-kernel mask.
        "b_out": pad_cols(b_out_f32, v_pad, value=-1e30),
        # Unpadded f32 weights for the reference path.
        "ref": {"w_in": w_in_f32, "b_in": b_in_f32, "hidden": hidden_f32,
                "w_out": w_out_f32, "b_out": b_out_f32},
    }


def reference_forward(vec_features, word_features, params):
    """Pure-JAX f32 reference for correctness checking."""
    embedded = [tbl[word_features[:, i]].astype(jnp.float32)
                for i, tbl in enumerate(params["embeddings"])]
    x = jnp.concatenate([vec_features] + embedded, axis=1)
    r = params["ref"]
    h = x @ r["w_in"] + r["b_in"]
    for (w, b) in r["hidden"]:
        h = jnp.maximum(h, 0.0) @ w + b
    h = jnp.maximum(h, 0.0)
    logits = h @ r["w_out"] + r["b_out"]
    return jax.nn.log_softmax(logits, axis=1)


if __name__ == "__main__":
    # Small shapes consistent with the module.
    batch_size = 8
    vec_features_size = 16
    word_feature_vocab_sizes = [10, 12, 14]
    hidden_size = 32
    word_embedding_size = 8
    tactic_vocab_size = 16
    num_layers = 3

    key = jax.random.PRNGKey(0)
    k_params, k_vec, k_word = jax.random.split(key, 3)

    params = init_params(k_params, vec_features_size, word_feature_vocab_sizes,
                         hidden_size, word_embedding_size, tactic_vocab_size,
                         num_layers)

    vec_features = jax.random.normal(
        k_vec, (batch_size, vec_features_size), jnp.float32)
    word_keys = jax.random.split(k_word, len(word_feature_vocab_sizes))
    word_features = jnp.stack(
        [jax.random.randint(word_keys[i], (batch_size,), 0,
                            word_feature_vocab_sizes[i], jnp.int32)
         for i in range(len(word_feature_vocab_sizes))], axis=1)

    out = features_classifier_pallas(vec_features, word_features, params)
    out = jax.block_until_ready(out)

    ref = reference_forward(vec_features, word_features, params)
    assert out.shape == (batch_size, tactic_vocab_size)
    # Loose tolerance: kernel runs matmuls in bf16 with f32 accumulation.
    assert jnp.allclose(out, ref, atol=5e-2, rtol=5e-2), \
        float(jnp.max(jnp.abs(out - ref)))

    print("KERNEL_OK")
</pallas_src>

<mosaic_0001>
module attributes {stable_mosaic.version = 11 : i64} {
  func.func @_mlp_logsoftmax_kernel(%arg0: i32, %arg1: memref<16x40xbf16, #tpu.memory_space<vmem>>, %arg2: memref<40x128xbf16, #tpu.memory_space<vmem>>, %arg3: memref<1x128xf32, #tpu.memory_space<vmem>>, %arg4: memref<128x128xbf16, #tpu.memory_space<vmem>>, %arg5: memref<1x128xf32, #tpu.memory_space<vmem>>, %arg6: memref<128x128xbf16, #tpu.memory_space<vmem>>, %arg7: memref<1x128xf32, #tpu.memory_space<vmem>>, %arg8: memref<128x128xbf16, #tpu.memory_space<vmem>>, %arg9: memref<1x128xf32, #tpu.memory_space<vmem>>, %arg10: memref<16x128xf32, #tpu.memory_space<vmem>>) attributes {dimension_semantics = [#tpu.dimension_semantics<parallel>], iteration_bounds = array<i64: 1>, scalar_prefetch = 0 : i64, scratch_operands = 0 : i64, tpu.core_type = #tpu.core_type<tc>, window_params = [{transform_indices = @transform_0, window_bounds = array<i64: 16, 40>}, {pipeline_mode = #tpu.pipeline_mode<synchronous>, transform_indices = @transform_1, window_bounds = array<i64: 40, 128>}, {pipeline_mode = #tpu.pipeline_mode<synchronous>, transform_indices = @transform_2, window_bounds = array<i64: 1, 128>}, {pipeline_mode = #tpu.pipeline_mode<synchronous>, transform_indices = @transform_3, window_bounds = array<i64: 128, 128>}, {pipeline_mode = #tpu.pipeline_mode<synchronous>, transform_indices = @transform_4, window_bounds = array<i64: 1, 128>}, {pipeline_mode = #tpu.pipeline_mode<synchronous>, transform_indices = @transform_5, window_bounds = array<i64: 128, 128>}, {pipeline_mode = #tpu.pipeline_mode<synchronous>, transform_indices = @transform_6, window_bounds = array<i64: 1, 128>}, {pipeline_mode = #tpu.pipeline_mode<synchronous>, transform_indices = @transform_7, window_bounds = array<i64: 128, 128>}, {pipeline_mode = #tpu.pipeline_mode<synchronous>, transform_indices = @transform_8, window_bounds = array<i64: 1, 128>}, {transform_indices = @transform_9, window_bounds = array<i64: 16, 128>}]} {
    %c0 = arith.constant 0 : index
    %c0_0 = arith.constant 0 : index
    %0 = vector.load %arg1[%c0, %c0_0] : memref<16x40xbf16, #tpu.memory_space<vmem>>, vector<16x40xbf16>
    %c0_1 = arith.constant 0 : index
    %c0_2 = arith.constant 0 : index
    %1 = vector.load %arg2[%c0_1, %c0_2] : memref<40x128xbf16, #tpu.memory_space<vmem>>, vector<40x128xbf16>
    %cst = arith.constant dense<0.000000e+00> : vector<16x128xf32>
    %2 = tpu.matmul %0, %1, %cst {dimension_numbers = #tpu.dot_dimension_numbers<[1], [0], [0], [1], [0, 0, 1, 1], [], []>} : vector<16x40xbf16>, vector<40x128xbf16>, vector<16x128xf32> -> vector<16x128xf32>
    %c0_3 = arith.constant 0 : index
    %c0_4 = arith.constant 0 : index
    %3 = vector.load %arg3[%c0_3, %c0_4] : memref<1x128xf32, #tpu.memory_space<vmem>>, vector<1x128xf32>
    %4 = vector.broadcast %3 : vector<1x128xf32> to vector<16x128xf32>
    %5 = arith.addf %2, %4 : vector<16x128xf32>
    %c0_5 = arith.constant 0 : index
    %c0_6 = arith.constant 0 : index
    %6 = vector.load %arg4[%c0_5, %c0_6] : memref<128x128xbf16, #tpu.memory_space<vmem>>, vector<128x128xbf16>
    %c0_7 = arith.constant 0 : index
    %c0_8 = arith.constant 0 : index
    %7 = vector.load %arg5[%c0_7, %c0_8] : memref<1x128xf32, #tpu.memory_space<vmem>>, vector<1x128xf32>
    %cst_9 = arith.constant 0.000000e+00 : f32
    %8 = vector.broadcast %cst_9 : f32 to vector<16x128xf32>
    %9 = arith.maximumf %5, %8 : vector<16x128xf32>
    %10 = arith.truncf %9 : vector<16x128xf32> to vector<16x128xbf16>
    %cst_10 = arith.constant dense<0.000000e+00> : vector<16x128xf32>
    %11 = tpu.matmul %10, %6, %cst_10 {dimension_numbers = #tpu.dot_dimension_numbers<[1], [0], [0], [1], [0, 0, 1, 1], [], []>} : vector<16x128xbf16>, vector<128x128xbf16>, vector<16x128xf32> -> vector<16x128xf32>
    %12 = vector.broadcast %7 : vector<1x128xf32> to vector<16x128xf32>
    %13 = arith.addf %11, %12 : vector<16x128xf32>
    %c0_11 = arith.constant 0 : index
    %c0_12 = arith.constant 0 : index
    %14 = vector.load %arg6[%c0_11, %c0_12] : memref<128x128xbf16, #tpu.memory_space<vmem>>, vector<128x128xbf16>
    %c0_13 = arith.constant 0 : index
    %c0_14 = arith.constant 0 : index
    %15 = vector.load %arg7[%c0_13, %c0_14] : memref<1x128xf32, #tpu.memory_space<vmem>>, vector<1x128xf32>
    %cst_15 = arith.constant 0.000000e+00 : f32
    %16 = vector.broadcast %cst_15 : f32 to vector<16x128xf32>
    %17 = arith.maximumf %13, %16 : vector<16x128xf32>
    %18 = arith.truncf %17 : vector<16x128xf32> to vector<16x128xbf16>
    %cst_16 = arith.constant dense<0.000000e+00> : vector<16x128xf32>
    %19 = tpu.matmul %18, %14, %cst_16 {dimension_numbers = #tpu.dot_dimension_numbers<[1], [0], [0], [1], [0, 0, 1, 1], [], []>} : vector<16x128xbf16>, vector<128x128xbf16>, vector<16x128xf32> -> vector<16x128xf32>
    %20 = vector.broadcast %15 : vector<1x128xf32> to vector<16x128xf32>
    %21 = arith.addf %19, %20 : vector<16x128xf32>
    %cst_17 = arith.constant 0.000000e+00 : f32
    %22 = vector.broadcast %cst_17 : f32 to vector<16x128xf32>
    %23 = arith.maximumf %21, %22 : vector<16x128xf32>
    %c0_18 = arith.constant 0 : index
    %c0_19 = arith.constant 0 : index
    %24 = vector.load %arg8[%c0_18, %c0_19] : memref<128x128xbf16, #tpu.memory_space<vmem>>, vector<128x128xbf16>
    %c0_20 = arith.constant 0 : index
    %c0_21 = arith.constant 0 : index
    %25 = vector.load %arg9[%c0_20, %c0_21] : memref<1x128xf32, #tpu.memory_space<vmem>>, vector<1x128xf32>
    %26 = arith.truncf %23 : vector<16x128xf32> to vector<16x128xbf16>
    %cst_22 = arith.constant dense<0.000000e+00> : vector<16x128xf32>
    %27 = tpu.matmul %26, %24, %cst_22 {dimension_numbers = #tpu.dot_dimension_numbers<[1], [0], [0], [1], [0, 0, 1, 1], [], []>} : vector<16x128xbf16>, vector<128x128xbf16>, vector<16x128xf32> -> vector<16x128xf32>
    %28 = vector.broadcast %25 : vector<1x128xf32> to vector<16x128xf32>
    %29 = arith.addf %27, %28 : vector<16x128xf32>
    %cst_23 = arith.constant dense<0xFF800000> : vector<16xf32>
    %30 = vector.multi_reduction <maximumf>, %29, %cst_23 [1] : vector<16x128xf32> to vector<16xf32>
    %31 = vector.shape_cast %30 : vector<16xf32> to vector<16x1xf32>
    %32 = vector.broadcast %31 : vector<16x1xf32> to vector<16x128xf32>
    %33 = arith.subf %29, %32 : vector<16x128xf32>
    %34 = math.exp %33 : vector<16x128xf32>
    %cst_24 = arith.constant dense<0.000000e+00> : vector<16xf32>
    %35 = vector.multi_reduction <add>, %34, %cst_24 [1] : vector<16x128xf32> to vector<16xf32>
    %36 = vector.shape_cast %35 : vector<16xf32> to vector<16x1xf32>
    %37 = math.log %36 : vector<16x1xf32>
    %38 = vector.broadcast %37 : vector<16x1xf32> to vector<16x128xf32>
    %39 = arith.subf %33, %38 : vector<16x128xf32>
    %c0_25 = arith.constant 0 : index
    %c0_26 = arith.constant 0 : index
    %40 = vector.load %arg10[%c0_25, %c0_26] : memref<16x128xf32, #tpu.memory_space<vmem>>, vector<16x128xf32>
    tpu.vector_store %arg10[%c0_25, %c0_26], %39 {strides = array<i32>} : memref<16x128xf32, #tpu.memory_space<vmem>>, vector<16x128xf32>,
    return
  }
  func.func @transform_0(%arg0: i32) -> (i32, i32) {
    %c0_i32 = arith.constant 0 : i32
    %c0_i32_0 = arith.constant 0 : i32
    return %arg0, %c0_i32 : i32, i32
  }
  func.func @transform_1(%arg0: i32) -> (i32, i32) {
    %c0_i32 = arith.constant 0 : i32
    %c0_i32_0 = arith.constant 0 : i32
    %c0_i32_1 = arith.constant 0 : i32
    return %c0_i32, %c0_i32_0 : i32, i32
  }
  func.func @transform_2(%arg0: i32) -> (i32, i32) {
    %c0_i32 = arith.constant 0 : i32
    %c0_i32_0 = arith.constant 0 : i32
    %c0_i32_1 = arith.constant 0 : i32
    return %c0_i32, %c0_i32_0 : i32, i32
  }
  func.func @transform_3(%arg0: i32) -> (i32, i32) {
    %c0_i32 = arith.constant 0 : i32
    %c0_i32_0 = arith.constant 0 : i32
    %c0_i32_1 = arith.constant 0 : i32
    return %c0_i32, %c0_i32_0 : i32, i32
  }
  func.func @transform_4(%arg0: i32) -> (i32, i32) {
    %c0_i32 = arith.constant 0 : i32
    %c0_i32_0 = arith.constant 0 : i32
    %c0_i32_1 = arith.constant 0 : i32
    return %c0_i32, %c0_i32_0 : i32, i32
  }
  func.func @transform_5(%arg0: i32) -> (i32, i32) {
    %c0_i32 = arith.constant 0 : i32
    %c0_i32_0 = arith.constant 0 : i32
    %c0_i32_1 = arith.constant 0 : i32
    return %c0_i32, %c0_i32_0 : i32, i32
  }
  func.func @transform_6(%arg0: i32) -> (i32, i32) {
    %c0_i32 = arith.constant 0 : i32
    %c0_i32_0 = arith.constant 0 : i32
    %c0_i32_1 = arith.constant 0 : i32
    return %c0_i32, %c0_i32_0 : i32, i32
  }
  func.func @transform_7(%arg0: i32) -> (i32, i32) {
    %c0_i32 = arith.constant 0 : i32
    %c0_i32_0 = arith.constant 0 : i32
    %c0_i32_1 = arith.constant 0 : i32
    return %c0_i32, %c0_i32_0 : i32, i32
  }
  func.func @transform_8(%arg0: i32) -> (i32, i32) {
    %c0_i32 = arith.constant 0 : i32
    %c0_i32_0 = arith.constant 0 : i32
    %c0_i32_1 = arith.constant 0 : i32
    return %c0_i32, %c0_i32_0 : i32, i32
  }
  func.func @transform_9(%arg0: i32) -> (i32, i32) {
    %c0_i32 = arith.constant 0 : i32
    %c0_i32_0 = arith.constant 0 : i32
    return %arg0, %c0_i32 : i32, i32
  }
}

</mosaic_0001>

<llo_original>
// kernel: tpu_custom_call.1
$region0: #{tpu_custom_call.1}
  #allocation0 [shape = 'u32[]', space=smem, size = 0x4, offset = 0x4, fixed_abs, tag = 'smem constant byte address 0x4 - core index']
  #allocation1 [shape = 'u32[144,128]{1,0:T(1,128)}', space=vmem, size = 0x12000, scoped, tag = 'internal scratch']
  %s0 = inlined_call_operand.hbm [shape: bf16[16,40], index: 0, kind: input, shape index: {}]
  %s1 = inlined_call_operand.hbm [shape: bf16[40,128], index: 1, kind: input, shape index: {}]
  %s2 = inlined_call_operand.vmem [shape: f32[1,128], index: 2, kind: input, shape index: {}]
  %s3 = inlined_call_operand.hbm [shape: bf16[128,128], index: 3, kind: input, shape index: {}]
  %s4 = inlined_call_operand.vmem [shape: f32[1,128], index: 4, kind: input, shape index: {}]
  %s5 = inlined_call_operand.hbm [shape: bf16[128,128], index: 5, kind: input, shape index: {}]
  %s6 = inlined_call_operand.vmem [shape: f32[1,128], index: 6, kind: input, shape index: {}]
  %s7 = inlined_call_operand.hbm [shape: bf16[128,128], index: 7, kind: input, shape index: {}]
  %s8 = inlined_call_operand.vmem [shape: f32[1,128], index: 8, kind: input, shape index: {}]
  %s9 = inlined_call_operand.hbm [shape: f32[16,128], index: 9, kind: output, shape index: {}]
  %s10 = sld [smem:[#allocation0]]
  $region66: #{tpu_custom_call.1} parent=0
    _
  %s12 = ssub.s32 1, %s10
  %s13 = scalar_select 0, %s12, %s10
  $region1: #{tpu_custom_call.1} parent=0
    #allocation2 [shape = 'u8[4096]{0}', space=vmem, size = 0x1000, scoped, tag = 'input window, operand 0, single buffered']
    #allocation3 [shape = 's32[1]{0}', space=sflag, size = 0x4, scoped, tag = 'scoped memory for tpu_custom_call.1']
    #allocation4 [shape = 's32[1]{0}', space=sflag, size = 0x4, scoped, tag = 'scoped memory for tpu_custom_call.1']
    #allocation5 [shape = 'u8[10240]{0}', space=vmem, size = 0x2800, scoped, tag = 'input window, operand 1, single buffered']
    #allocation6 [shape = 's32[1]{0}', space=sflag, size = 0x4, scoped, tag = 'scoped memory for tpu_custom_call.1']
    #allocation7 [shape = 'u8[32768]{0}', space=vmem, size = 0x8000, scoped, tag = 'input window, operand 3, single buffered']
    #allocation8 [shape = 'u8[32768]{0}', space=vmem, size = 0x8000, scoped, tag = 'input window, operand 5, single buffered']
    #allocation9 [shape = 's32[1]{0}', space=sflag, size = 0x4, scoped, tag = 'scoped memory for tpu_custom_call.1']
    #allocation10 [shape = 'u8[32768]{0}', space=vmem, size = 0x8000, scoped, tag = 'input window, operand 7, single buffered']
    #allocation11 [shape = 'u8[8192]{0}', space=vmem, size = 0x2000, scoped, tag = 'output window, operand 0, single buffered']
    %14 = vsyncpa [#allocation3], 0
    %15 = vsyncpa [#allocation6], 0
    %16 = vsyncpa [#allocation9], 0
    %17 = vsyncpa [#allocation4], 0
    // Predicated region
    $region2: #{tpu_custom_call.1} parent=1 // pred_check
      _
    $region3: #{tpu_custom_call.1} parent=1 // pred_check_branch
      %19 = sbr.rel (0) target = $region5
    $region4: #{tpu_custom_call.1} parent=1 // pred_region
      %s21 = ssub.s32 128, 128
      %22 = vsyncadd [#allocation3], %s21
      %s23 = sshll.u32 [#allocation2], 4
      %s24 = int_to_ptr.vmem [resolvable:$true] %s23
      %29 = dma.hbm_to_vmem [thread:$0]  %s0, 128, %s24, [#allocation3], 64, 64, 4
    $region5: #{tpu_custom_call.1} parent=1 // pred_fallthru
      _
    // Predicated region
    $region6: #{tpu_custom_call.1} parent=1 // pred_check
      _
    $region7: #{tpu_custom_call.1} parent=1 // pred_check_branch
      %31 = sbr.rel (0) target = $region9
    $region8: #{tpu_custom_call.1} parent=1 // pred_region
      %s33 = ssub.s32 320, 320
      %34 = vsyncadd [#allocation6], %s33
      %s35 = sshll.u32 [#allocation5], 4
      %s36 = int_to_ptr.vmem [resolvable:$true] %s35
      %41 = dma.hbm_to_vmem [thread:$0]  %s1, 320, %s36, [#allocation6], 64, 64, 4
    $region9: #{tpu_custom_call.1} parent=1 // pred_fallthru
      _
    // Predicated region
    $region10: #{tpu_custom_call.1} parent=1 // pred_check
      _
    $region11: #{tpu_custom_call.1} parent=1 // pred_check_branch
      %43 = sbr.rel (0) target = $region13
    $region12: #{tpu_custom_call.1} parent=1 // pred_region
      _
    $region13: #{tpu_custom_call.1} parent=1 // pred_fallthru
      _
    // Predicated region
    $region14: #{tpu_custom_call.1} parent=1 // pred_check
      _
    $region15: #{tpu_custom_call.1} parent=1 // pred_check_branch
      %45 = sbr.rel (0) target = $region17
    $region16: #{tpu_custom_call.1} parent=1 // pred_region
      %s47 = ssub.s32 1024, 1024
      %48 = vsyncadd [#allocation6], %s47
      %s49 = sshll.u32 [#allocation7], 4
      %s50 = int_to_ptr.vmem [resolvable:$true] %s49
      %55 = dma.hbm_to_vmem [thread:$0]  %s3, 1024, %s50, [#allocation6], 64, 64, 4
    $region17: #{tpu_custom_call.1} parent=1 // pred_fallthru
      _
    // Predicated region
    $region18: #{tpu_custom_call.1} parent=1 // pred_check
      _
    $region19: #{tpu_custom_call.1} parent=1 // pred_check_branch
      %57 = sbr.rel (0) target = $region21
    $region20: #{tpu_custom_call.1} parent=1 // pred_region
      _
    $region21: #{tpu_custom_call.1} parent=1 // pred_fallthru
      _
    // Predicated region
    $region22: #{tpu_custom_call.1} parent=1 // pred_check
      _
    $region23: #{tpu_custom_call.1} parent=1 // pred_check_branch
      %59 = sbr.rel (0) target = $region25
    $region24: #{tpu_custom_call.1} parent=1 // pred_region
      %s61 = ssub.s32 1024, 1024
      %62 = vsyncadd [#allocation9], %s61
      %s63 = sshll.u32 [#allocation8], 4
      %s64 = int_to_ptr.vmem [resolvable:$true] %s63
      %69 = dma.hbm_to_vmem [thread:$0]  %s5, 1024, %s64, [#allocation9], 64, 64, 4
    $region25: #{tpu_custom_call.1} parent=1 // pred_fallthru
      _
    // Predicated region
    $region26: #{tpu_custom_call.1} parent=1 // pred_check
      _
    $region27: #{tpu_custom_call.1} parent=1 // pred_check_branch
      %71 = sbr.rel (0) target = $region29
    $region28: #{tpu_custom_call.1} parent=1 // pred_region
      _
    $region29: #{tpu_custom_call.1} parent=1 // pred_fallthru
      _
    // Predicated region
    $region30: #{tpu_custom_call.1} parent=1 // pred_check
      _
    $region31: #{tpu_custom_call.1} parent=1 // pred_check_branch
      %73 = sbr.rel (0) target = $region33
    $region32: #{tpu_custom_call.1} parent=1 // pred_region
      %s75 = ssub.s32 1024, 1024
      %76 = vsyncadd [#allocation9], %s75
      %s77 = sshll.u32 [#allocation10], 4
      %s78 = int_to_ptr.vmem [resolvable:$true] %s77
      %83 = dma.hbm_to_vmem [thread:$0]  %s7, 1024, %s78, [#allocation9], 64, 64, 4
    $region33: #{tpu_custom_call.1} parent=1 // pred_fallthru
      _
    // Predicated region
    $region34: #{tpu_custom_call.1} parent=1 // pred_check
      _
    $region35: #{tpu_custom_call.1} parent=1 // pred_check_branch
      %85 = sbr.rel (0) target = $region37
    $region36: #{tpu_custom_call.1} parent=1 // pred_region
      _
    $region37: #{tpu_custom_call.1} parent=1 // pred_fallthru
      _
    // Predicated region
    $region38: #{tpu_custom_call.1} parent=1 // pred_check
      _
    $region39: #{tpu_custom_call.1} parent=1 // pred_check_branch
      %87 = sbr.rel (0) target = $region41
    $region40: #{tpu_custom_call.1} parent=1 // pred_region
      %88 = dma.done [#allocation3], 128
    $region41: #{tpu_custom_call.1} parent=1 // pred_fallthru
      _
    // Predicated region
    $region42: #{tpu_custom_call.1} parent=1 // pred_check
      _
    $region43: #{tpu_custom_call.1} parent=1 // pred_check_branch
      %90 = sbr.rel (0) target = $region45
    $region44: #{tpu_custom_call.1} parent=1 // pred_region
      %91 = dma.done [#allocation6], 320
    $region45: #{tpu_custom_call.1} parent=1 // pred_fallthru
      _
    // Predicated region
    $region46: #{tpu_custom_call.1} parent=1 // pred_check
      _
    $region47: #{tpu_custom_call.1} parent=1 // pred_check_branch
      %93 = sbr.rel (0) target = $region49
    $region48: #{tpu_custom_call.1} parent=1 // pred_region
      %94 = dma.done [#allocation6], 1024
    $region49: #{tpu_custom_call.1} parent=1 // pred_fallthru
      _
    // Predicated region
    $region50: #{tpu_custom_call.1} parent=1 // pred_check
      _
    $region51: #{tpu_custom_call.1} parent=1 // pred_check_branch
      %96 = sbr.rel (0) target = $region53
    $region52: #{tpu_custom_call.1} parent=1 // pred_region
      %97 = dma.done [#allocation9], 1024
    $region53: #{tpu_custom_call.1} parent=1 // pred_fallthru
      _
    // Predicated region
    $region54: #{tpu_custom_call.1} parent=1 // pred_check
      _
    $region55: #{tpu_custom_call.1} parent=1 // pred_check_branch
      %99 = sbr.rel (0) target = $region57
    $region56: #{tpu_custom_call.1} parent=1 // pred_region
      %100 = dma.done [#allocation9], 1024
    $region57: #{tpu_custom_call.1} parent=1 // pred_fallthru
      _
    %v102 = vld [vmem:[#allocation2] sm:$0xf]
    %v103 = vld [vmem:[#allocation2 + $0x4] sm:$0xf]
    %v104 = vld [vmem:[#allocation5] sm:$0xf]
    %v105 = vld [vmem:[#allocation5 + $0x4] sm:$0xf]
    %v106 = vld [vmem:[#allocation5 + $0x8] sm:$0xf]
    %v107 = vld [vmem:[#allocation5 + $0xc] sm:$0xf]
    %v108 = vld [vmem:[#allocation5 + $0x10] sm:$0xf]
    %v109 = vld [vmem:[%s2] sm:$0x1]
    %v111 = vlaneseq
    %v112 = vshrl.u32 %v111, 7
    %v113 = vsub.s32 0, %v112
    %v114 = vrot.slane %v109, %v113
    %v118 = vunpack.c.l.b16 %v102
    %v119 = vunpack.c.l.b16 %v103
    %v120 = vpack.c.b16 %v119, %v118
    %v126 = vunpack.c.l.b16 %v104
    %v127 = vunpack.c.l.b16 %v105
    %v128 = vunpack.c.l.b16 %v106
    %v129 = vunpack.c.l.b16 %v107
    %v130 = vunpack.c.l.b16 %v108
    %v131 = vpack.c.b16 %v127, %v126
    %v132 = vpack.c.b16 %v129, %v128
    %v133 = vpack.c.b16 %v130, %v130
    %vm136 = vcmask 326656
    %v138 = vsel %vm136, %v120, 0
    %vm140 = vcmask 1043456
    %v142 = vsel %vm140, %v133, 0
    %144 = vmatprep.subr.bf16.mxu0 0
    %145 = vmatpush1.bf16.msra.mxu0 %v131
    %146 = vmatprep.subr.bf16.mxu0 0
    %147 = vmatpush1.bf16.msra.mxu0 %v132
    %148 = vmatprep.subr.bf16.mxu0 0
    %149 = vmatpush1.bf16.msra.mxu0 %v142
    %150 = vmatprep.subr.bf16.mxu0 0
    %151 = vmatpush1.bf16.msra.mxu0 0
    %152 = vmatprep.subr.bf16.mxu0 0
    %153 = vmatpush1.bf16.msra.mxu0 0
    %154 = vmatprep.subr.bf16.mxu0 0
    %155 = vmatpush1.bf16.msra.mxu0 0
    %156 = vmatprep.subr.bf16.mxu0 0
    %157 = vmatpush1.bf16.msra.mxu0 0
    %158 = vmatprep.subr.bf16.mxu0 0
    %159 = vmatpush1.bf16.msra.mxu0 0
    %160 = vmatprep.subr.bf16.mxu0 0
    %161 = vmatpush1.bf16.msra.mxu0 0
    %162 = vmatprep.subr.bf16.mxu0 0
    %163 = vmatpush1.bf16.msra.mxu0 0
    %164 = vmatprep.subr.bf16.mxu0 0
    %165 = vmatpush1.bf16.msra.mxu0 0
    %166 = vmatprep.subr.bf16.mxu0 0
    %167 = vmatpush1.bf16.msra.mxu0 0
    %168 = vmatprep.subr.bf16.mxu0 0
    %169 = vmatpush1.bf16.msra.mxu0 0
    %170 = vmatprep.subr.bf16.mxu0 0
    %171 = vmatpush1.bf16.msra.mxu0 0
    %172 = vmatprep.subr.bf16.mxu0 0
    %173 = vmatpush1.bf16.msra.mxu0 0
    %174 = vmatprep.subr.bf16.mxu0 0
    %175 = vmatpush1.bf16.msra.mxu0 0
    %176 = vmatprep.mubr.bf16.mxu0 0
    %177 = vmatmul.mubr.bf16.gmra.mrb[0].mxu0 %v138
    %v178 = vpop.f32.mrb[0].mxu0
    %v179 = vadd.f32 %v114, %v178
    %v180 = vpop.f32.mrb[0].mxu0
    %v181 = vpop.f32.mrb[0].mxu0
    %v182 = vadd.f32 %v114, %v181
    %v183 = vpop.f32.mrb[0].mxu0
    %184 = vdwg.mxu0
    %v185 = vld [vmem:[#allocation7] sm:$0xf]
    %v186 = vld [vmem:[#allocation7 + $0x4] sm:$0xf]
    %v187 = vld [vmem:[#allocation7 + $0x8] sm:$0xf]
    %v188 = vld [vmem:[#allocation7 + $0xc] sm:$0xf]
    %v189 = vld [vmem:[#allocation7 + $0x10] sm:$0xf]
    %v190 = vld [vmem:[#allocation7 + $0x14] sm:$0xf]
    %v191 = vld [vmem:[#allocation7 + $0x18] sm:$0xf]
    %v192 = vld [vmem:[#allocation7 + $0x1c] sm:$0xf]
    %v193 = vld [vmem:[#allocation7 + $0x20] sm:$0xf]
    %v194 = vld [vmem:[#allocation7 + $0x24] sm:$0xf]
    %v195 = vld [vmem:[#allocation7 + $0x28] sm:$0xf]
    %v196 = vld [vmem:[#allocation7 + $0x2c] sm:$0xf]
    %v197 = vld [vmem:[#allocation7 + $0x30] sm:$0xf]
    %v198 = vld [vmem:[#allocation7 + $0x34] sm:$0xf]
    %v199 = vld [vmem:[#allocation7 + $0x38] sm:$0xf]
    %v200 = vld [vmem:[#allocation7 + $0x3c] sm:$0xf]
    %v201 = vld [vmem:[%s4] sm:$0x1]
    %v202 = vmax.f32 %v179, 0.0
    %v203 = vmax.f32 %v182, 0.0
    %v204 = vpack.c.bf16 %v203, %v202
    %v206 = vlaneseq
    %v207 = vshrl.u32 %v206, 7
    %v208 = vsub.s32 0, %v207
    %v209 = vrot.slane %v201, %v208
    %v227 = vunpack.c.l.b16 %v185
    %v228 = vunpack.c.l.b16 %v186
    %v229 = vunpack.c.l.b16 %v187
    %v230 = vunpack.c.l.b16 %v188
    %v231 = vunpack.c.l.b16 %v189
    %v232 = vunpack.c.l.b16 %v190
    %v233 = vunpack.c.l.b16 %v191
    %v234 = vunpack.c.l.b16 %v192
    %v235 = vunpack.c.l.b16 %v193
    %v236 = vunpack.c.l.b16 %v194
    %v237 = vunpack.c.l.b16 %v195
    %v238 = vunpack.c.l.b16 %v196
    %v239 = vunpack.c.l.b16 %v197
    %v240 = vunpack.c.l.b16 %v198
    %v241 = vunpack.c.l.b16 %v199
    %v242 = vunpack.c.l.b16 %v200
    %v243 = vpack.c.b16 %v228, %v227
    %v244 = vpack.c.b16 %v230, %v229
    %v245 = vpack.c.b16 %v232, %v231
    %v246 = vpack.c.b16 %v234, %v233
    %v247 = vpack.c.b16 %v236, %v235
    %v248 = vpack.c.b16 %v238, %v237
    %v249 = vpack.c.b16 %v240, %v239
    %v250 = vpack.c.b16 %v242, %v241
    %259 = vmatprep.subr.bf16.mxu0 0
    %260 = vmatpush1.bf16.msra.mxu0 %v243
    %261 = vmatprep.subr.bf16.mxu0 0
    %262 = vmatpush1.bf16.msra.mxu0 %v244
    %263 = vmatprep.subr.bf16.mxu0 0
    %264 = vmatpush1.bf16.msra.mxu0 %v245
    %265 = vmatprep.subr.bf16.mxu0 0
    %266 = vmatpush1.bf16.msra.mxu0 %v246
    %267 = vmatprep.subr.bf16.mxu0 0
    %268 = vmatpush1.bf16.msra.mxu0 %v247
    %269 = vmatprep.subr.bf16.mxu0 0
    %270 = vmatpush1.bf16.msra.mxu0 %v248
    %271 = vmatprep.subr.bf16.mxu0 0
    %272 = vmatpush1.bf16.msra.mxu0 %v249
    %273 = vmatprep.subr.bf16.mxu0 0
    %274 = vmatpush1.bf16.msra.mxu0 %v250
    %275 = vmatprep.subr.bf16.mxu0 0
    %276 = vmatpush1.bf16.msra.mxu0 0
    %277 = vmatprep.subr.bf16.mxu0 0
    %278 = vmatpush1.bf16.msra.mxu0 0
    %279 = vmatprep.subr.bf16.mxu0 0
    %280 = vmatpush1.bf16.msra.mxu0 0
    %281 = vmatprep.subr.bf16.mxu0 0
    %282 = vmatpush1.bf16.msra.mxu0 0
    %283 = vmatprep.subr.bf16.mxu0 0
    %284 = vmatpush1.bf16.msra.mxu0 0
    %285 = vmatprep.subr.bf16.mxu0 0
    %286 = vmatpush1.bf16.msra.mxu0 0
    %287 = vmatprep.subr.bf16.mxu0 0
    %288 = vmatpush1.bf16.msra.mxu0 0
    %289 = vmatprep.subr.bf16.mxu0 0
    %290 = vmatpush1.bf16.msra.mxu0 0
    %291 = vmatprep.mubr.bf16.mxu0 0
    %292 = vmatmul.mubr.bf16.gmra.mrb[0].mxu0 %v204
    %v293 = vpop.f32.mrb[0].mxu0
    %v294 = vadd.f32 %v209, %v293
    %v295 = vpop.f32.mrb[0].mxu0
    %v296 = vpop.f32.mrb[0].mxu0
    %v297 = vadd.f32 %v209, %v296
    %v298 = vpop.f32.mrb[0].mxu0
    %299 = vdwg.mxu0
    %v300 = vld [vmem:[#allocation8] sm:$0xf]
    %v301 = vld [vmem:[#allocation8 + $0x4] sm:$0xf]
    %v302 = vld [vmem:[#allocation8 + $0x8] sm:$0xf]
    %v303 = vld [vmem:[#allocation8 + $0xc] sm:$0xf]
    %v304 = vld [vmem:[#allocation8 + $0x10] sm:$0xf]
    %v305 = vld [vmem:[#allocation8 + $0x14] sm:$0xf]
    %v306 = vld [vmem:[#allocation8 + $0x18] sm:$0xf]
    %v307 = vld [vmem:[#allocation8 + $0x1c] sm:$0xf]
    %v308 = vld [vmem:[#allocation8 + $0x20] sm:$0xf]
    %v309 = vld [vmem:[#allocation8 + $0x24] sm:$0xf]
    %v310 = vld [vmem:[#allocation8 + $0x28] sm:$0xf]
    %v311 = vld [vmem:[#allocation8 + $0x2c] sm:$0xf]
    %v312 = vld [vmem:[#allocation8 + $0x30] sm:$0xf]
    %v313 = vld [vmem:[#allocation8 + $0x34] sm:$0xf]
    %v314 = vld [vmem:[#allocation8 + $0x38] sm:$0xf]
    %v315 = vld [vmem:[#allocation8 + $0x3c] sm:$0xf]
    %v316 = vld [vmem:[%s6] sm:$0x1]
    %v317 = vmax.f32 %v294, 0.0
    %v318 = vmax.f32 %v297, 0.0
    %v319 = vpack.c.bf16 %v318, %v317
    %v321 = vlaneseq
    %v322 = vshrl.u32 %v321, 7
    %v323 = vsub.s32 0, %v322
    %v324 = vrot.slane %v316, %v323
    %v342 = vunpack.c.l.b16 %v300
    %v343 = vunpack.c.l.b16 %v301
    %v344 = vunpack.c.l.b16 %v302
    %v345 = vunpack.c.l.b16 %v303
    %v346 = vunpack.c.l.b16 %v304
    %v347 = vunpack.c.l.b16 %v305
    %v348 = vunpack.c.l.b16 %v306
    %v349 = vunpack.c.l.b16 %v307
    %v350 = vunpack.c.l.b16 %v308
    %v351 = vunpack.c.l.b16 %v309
    %v352 = vunpack.c.l.b16 %v310
    %v353 = vunpack.c.l.b16 %v311
    %v354 = vunpack.c.l.b16 %v312
    %v355 = vunpack.c.l.b16 %v313
    %v356 = vunpack.c.l.b16 %v314
    %v357 = vunpack.c.l.b16 %v315
    %v358 = vpack.c.b16 %v343, %v342
    %v359 = vpack.c.b16 %v345, %v344
    %v360 = vpack.c.b16 %v347, %v346
    %v361 = vpack.c.b16 %v349, %v348
    %v362 = vpack.c.b16 %v351, %v350
    %v363 = vpack.c.b16 %v353, %v352
    %v364 = vpack.c.b16 %v355, %v354
    %v365 = vpack.c.b16 %v357, %v356
    %374 = vmatprep.subr.bf16.mxu0 0
    %375 = vmatpush1.bf16.msra.mxu0 %v358
    %376 = vmatprep.subr.bf16.mxu0 0
    %377 = vmatpush1.bf16.msra.mxu0 %v359
    %378 = vmatprep.subr.bf16.mxu0 0
    %379 = vmatpush1.bf16.msra.mxu0 %v360
    %380 = vmatprep.subr.bf16.mxu0 0
    %381 = vmatpush1.bf16.msra.mxu0 %v361
    %382 = vmatprep.subr.bf16.mxu0 0
    %383 = vmatpush1.bf16.msra.mxu0 %v362
    %384 = vmatprep.subr.bf16.mxu0 0
    %385 = vmatpush1.bf16.msra.mxu0 %v363
    %386 = vmatprep.subr.bf16.mxu0 0
    %387 = vmatpush1.bf16.msra.mxu0 %v364
    %388 = vmatprep.subr.bf16.mxu0 0
    %389 = vmatpush1.bf16.msra.mxu0 %v365
    %390 = vmatprep.subr.bf16.mxu0 0
    %391 = vmatpush1.bf16.msra.mxu0 0
    %392 = vmatprep.subr.bf16.mxu0 0
    %393 = vmatpush1.bf16.msra.mxu0 0
    %394 = vmatprep.subr.bf16.mxu0 0
    %395 = vmatpush1.bf16.msra.mxu0 0
    %396 = vmatprep.subr.bf16.mxu0 0
    %397 = vmatpush1.bf16.msra.mxu0 0
    %398 = vmatprep.subr.bf16.mxu0 0
    %399 = vmatpush1.bf16.msra.mxu0 0
    %400 = vmatprep.subr.bf16.mxu0 0
    %401 = vmatpush1.bf16.msra.mxu0 0
    %402 = vmatprep.subr.bf16.mxu0 0
    %403 = vmatpush1.bf16.msra.mxu0 0
    %404 = vmatprep.subr.bf16.mxu0 0
    %405 = vmatpush1.bf16.msra.mxu0 0
    %406 = vmatprep.mubr.bf16.mxu0 0
    %407 = vmatmul.mubr.bf16.gmra.mrb[0].mxu0 %v319
    %v408 = vpop.f32.mrb[0].mxu0
    %v409 = vadd.f32 %v324, %v408
    %v410 = vpop.f32.mrb[0].mxu0
    %v411 = vpop.f32.mrb[0].mxu0
    %v412 = vadd.f32 %v324, %v411
    %v413 = vpop.f32.mrb[0].mxu0
    %414 = vdwg.mxu0
    %v415 = vmax.f32 %v409, 0.0
    %v416 = vmax.f32 %v412, 0.0
    %v417 = vld [vmem:[#allocation10] sm:$0xf]
    %v418 = vld [vmem:[#allocation10 + $0x4] sm:$0xf]
    %v419 = vld [vmem:[#allocation10 + $0x8] sm:$0xf]
    %v420 = vld [vmem:[#allocation10 + $0xc] sm:$0xf]
    %v421 = vld [vmem:[#allocation10 + $0x10] sm:$0xf]
    %v422 = vld [vmem:[#allocation10 + $0x14] sm:$0xf]
    %v423 = vld [vmem:[#allocation10 + $0x18] sm:$0xf]
    %v424 = vld [vmem:[#allocation10 + $0x1c] sm:$0xf]
    %v425 = vld [vmem:[#allocation10 + $0x20] sm:$0xf]
    %v426 = vld [vmem:[#allocation10 + $0x24] sm:$0xf]
    %v427 = vld [vmem:[#allocation10 + $0x28] sm:$0xf]
    %v428 = vld [vmem:[#allocation10 + $0x2c] sm:$0xf]
    %v429 = vld [vmem:[#allocation10 + $0x30] sm:$0xf]
    %v430 = vld [vmem:[#allocation10 + $0x34] sm:$0xf]
    %v431 = vld [vmem:[#allocation10 + $0x38] sm:$0xf]
    %v432 = vld [vmem:[#allocation10 + $0x3c] sm:$0xf]
    %v433 = vld [vmem:[%s8] sm:$0x1]
    %v434 = vpack.c.bf16 %v416, %v415
    %v436 = vlaneseq
    %v437 = vshrl.u32 %v436, 7
    %v438 = vsub.s32 0, %v437
    %v439 = vrot.slane %v433, %v438
    %v457 = vunpack.c.l.b16 %v417
    %v458 = vunpack.c.l.b16 %v418
    %v459 = vunpack.c.l.b16 %v419
    %v460 = vunpack.c.l.b16 %v420
    %v461 = vunpack.c.l.b16 %v421
    %v462 = vunpack.c.l.b16 %v422
    %v463 = vunpack.c.l.b16 %v423
    %v464 = vunpack.c.l.b16 %v424
    %v465 = vunpack.c.l.b16 %v425
    %v466 = vunpack.c.l.b16 %v426
    %v467 = vunpack.c.l.b16 %v427
    %v468 = vunpack.c.l.b16 %v428
    %v469 = vunpack.c.l.b16 %v429
    %v470 = vunpack.c.l.b16 %v430
    %v471 = vunpack.c.l.b16 %v431
    %v472 = vunpack.c.l.b16 %v432
    %v473 = vpack.c.b16 %v458, %v457
    %v474 = vpack.c.b16 %v460, %v459
    %v475 = vpack.c.b16 %v462, %v461
    %v476 = vpack.c.b16 %v464, %v463
    %v477 = vpack.c.b16 %v466, %v465
    %v478 = vpack.c.b16 %v468, %v467
    %v479 = vpack.c.b16 %v470, %v469
    %v480 = vpack.c.b16 %v472, %v471
    %489 = vmatprep.subr.bf16.mxu0 0
    %490 = vmatpush1.bf16.msra.mxu0 %v473
    %491 = vmatprep.subr.bf16.mxu0 0
    %492 = vmatpush1.bf16.msra.mxu0 %v474
    %493 = vmatprep.subr.bf16.mxu0 0
    %494 = vmatpush1.bf16.msra.mxu0 %v475
    %495 = vmatprep.subr.bf16.mxu0 0
    %496 = vmatpush1.bf16.msra.mxu0 %v476
    %497 = vmatprep.subr.bf16.mxu0 0
    %498 = vmatpush1.bf16.msra.mxu0 %v477
    %499 = vmatprep.subr.bf16.mxu0 0
    %500 = vmatpush1.bf16.msra.mxu0 %v478
    %501 = vmatprep.subr.bf16.mxu0 0
    %502 = vmatpush1.bf16.msra.mxu0 %v479
    %503 = vmatprep.subr.bf16.mxu0 0
    %504 = vmatpush1.bf16.msra.mxu0 %v480
    %505 = vmatprep.subr.bf16.mxu0 0
    %506 = vmatpush1.bf16.msra.mxu0 0
    %507 = vmatprep.subr.bf16.mxu0 0
    %508 = vmatpush1.bf16.msra.mxu0 0
    %509 = vmatprep.subr.bf16.mxu0 0
    %510 = vmatpush1.bf16.msra.mxu0 0
    %511 = vmatprep.subr.bf16.mxu0 0
    %512 = vmatpush1.bf16.msra.mxu0 0
    %513 = vmatprep.subr.bf16.mxu0 0
    %514 = vmatpush1.bf16.msra.mxu0 0
    %515 = vmatprep.subr.bf16.mxu0 0
    %516 = vmatpush1.bf16.msra.mxu0 0
    %517 = vmatprep.subr.bf16.mxu0 0
    %518 = vmatpush1.bf16.msra.mxu0 0
    %519 = vmatprep.subr.bf16.mxu0 0
    %520 = vmatpush1.bf16.msra.mxu0 0
    %521 = vmatprep.mubr.bf16.mxu0 0
    %522 = vmatmul.mubr.bf16.gmra.mrb[0].mxu0 %v434
    %v523 = vpop.f32.mrb[0].mxu0
    %v524 = vadd.f32 %v439, %v523
    %v525 = vpop.f32.mrb[0].mxu0
    %v526 = vpop.f32.mrb[0].mxu0
    %v527 = vadd.f32 %v439, %v526
    %v528 = vpop.f32.mrb[0].mxu0
    %529 = vdwg.mxu0
    %530 = vmax.xlane.f32.xlu0 %v524
    %v531 = vpop.xlane.xlu0 %530
    %532 = vmax.xlane.f32.xlu0 %v527
    %v533 = vpop.xlane.xlu0 %532
    %v534 = vsub.f32 %v524, %v531
    %v535 = vsub.f32 %v527, %v533
    %v536 = vmul.f32 %v534, 1.442695
    %v537 = vpow.pop %v536
    %v538 = vmul.f32 %v535, 1.442695
    %v539 = vpow.pop %v538
    %540 = vadd.xlane.f32.xlu0 %v537
    %v541 = vpop.xlane.xlu0 %540
    %542 = vadd.xlane.f32.xlu0 %v539
    %v543 = vpop.xlane.xlu0 %542
    %v544 = vlog2.pop %v541
    %v545 = vmul.f32 %v544, 0.6931472
    %v546 = vlog2.pop %v543
    %v547 = vmul.f32 %v546, 0.6931472
    %v548 = vsub.f32 %v534, %v545
    %v549 = vsub.f32 %v535, %v547
    %550 = vst [vmem:[#allocation11] sm:$0xff] %v548
    %551 = vst [vmem:[#allocation11 + $0x8] sm:$0xff] %v549
    // Predicated region
    $region58: #{tpu_custom_call.1} parent=1 // pred_check
      _
    $region59: #{tpu_custom_call.1} parent=1 // pred_check_branch
      %553 = sbr.rel (0) target = $region61
    $region60: #{tpu_custom_call.1} parent=1 // pred_region
      %s555 = ssub.s32 256, 256
      %556 = vsyncadd [#allocation4], %s555
      %s557 = sshll.u32 [#allocation11], 4
      %s558 = int_to_ptr.vmem [resolvable:$true] %s557
      %563 = dma.vmem_to_hbm [thread:$0]  %s558, 256, %s9, [#allocation4], 128, 128, 8
    $region61: #{tpu_custom_call.1} parent=1 // pred_fallthru
      _
    // Predicated region
    $region62: #{tpu_custom_call.1} parent=1 // pred_check
      _
    $region63: #{tpu_custom_call.1} parent=1 // pred_check_branch
      %565 = sbr.rel (0) target = $region65
    $region64: #{tpu_custom_call.1} parent=1 // pred_region
      %566 = dma.done [#allocation4], 256
    $region65: #{tpu_custom_call.1} parent=1 // pred_fallthru
      _
    %567 = vsyncpa [#allocation3], 1
    %568 = vsyncpa [#allocation6], 1
    %569 = vsyncpa [#allocation9], 1
    %570 = vsyncpa [#allocation4], 1

</llo_original>
